<compile_context>
chip_gen: v7x
topology: tpu7x:2x2x1
jax: 0.10.0
libtpu: 0.0.40
codegen_flags: <defaults>
</compile_context>

<pallas_src>
import functools

import numpy as np

import jax
import jax.numpy as jnp
from jax import lax
from jax.experimental import pallas as pl
from jax.experimental.pallas import tpu as pltpu


def _leaky_relu(x, neg_slope):
    return jnp.where(x >= 0.0, x, neg_slope * x)


def _log_sigmoid(x):
    # Numerically stable log(sigmoid(x)).
    return jnp.minimum(x, 0.0) - jnp.log1p(jnp.exp(-jnp.abs(x)))


# ---------------------------------------------------------------------------
# Fused kernel: NGCF propagation + layer mean + score row + BCE loss.
# ---------------------------------------------------------------------------
def ngcf_fused_kernel(user_emb_ref, item_emb_ref, w1t_ref, b1_ref, w2t_ref, b2_ref,
                      ybar_ref, probs_ref, loss_ref,
                      *, nu, ni, ni_pad, n_layers, adj_val, neg_slope):
    # Weights arrive pre-transposed to (in, out): plain x @ W, no RHS transpose.
    dim_nt = (((1,), (0,)), ((), ()))
    # Score row contracts the embedding dim of both operands.
    dim_tt = (((1,), (1,)), ((), ()))

    u0 = user_emb_ref[...]                               # (nu, D)
    i0 = item_emb_ref[...]                               # (ni, D)
    all_emb = jnp.concatenate([u0, i0], axis=0)          # (N, D), N = nu + ni
    acc = all_emb                                        # embeddings_list[0]

    n_total = nu + ni
    d = u0.shape[1]
    # Hoisted once: which rows belong to the user block.
    row_is_user = lax.broadcasted_iota(jnp.int32, (n_total, 1), 0) < nu

    # n_layers is a small static int -> unrolled at trace time.
    for l in range(n_layers):
        w1t = w1t_ref[l]                                 # (D, D) (in, out)
        b1 = b1_ref[l]                                   # (1, D)
        w2t = w2t_ref[l]                                 # (D, D)
        b2 = b2_ref[l]                                   # (1, D)

        # side = norm_adj @ all_emb for the all-ones bipartite graph (no self
        # loops): every user row gets adj_val * sum(item rows) and vice versa.
        side_u = adj_val * jnp.sum(all_emb[nu:, :], axis=0, keepdims=True)   # (1, D)
        side_i = adj_val * jnp.sum(all_emb[:nu, :], axis=0, keepdims=True)   # (1, D)
        side_full = jnp.where(row_is_user, side_u, side_i)                   # (N, D)

        # ONE W1 matmul per layer on the stacked block.
        sum_full = _leaky_relu(
            lax.dot_general(side_full, w1t, dim_nt,
                            preferred_element_type=jnp.float32) + b1,
            neg_slope)                                                        # (N, D)
        # ONE W2 matmul per layer on the stacked block.
        bi_full = _leaky_relu(
            lax.dot_general(all_emb * side_full, w2t, dim_nt,
                            preferred_element_type=jnp.float32) + b2,
            neg_slope)                                                        # (N, D)

        all_emb = sum_full + bi_full
        # F.normalize(p=2, dim=1): rsqrt (EUP) + mul instead of sqrt + divide.
        ss = jnp.sum(all_emb * all_emb, axis=1, keepdims=True)
        all_emb = all_emb * lax.rsqrt(jnp.maximum(ss, 1e-24))
        acc = acc + all_emb

    # scores = mean_u((mean_layers user) @ (mean_layers item)^T): fold both the
    # layer-mean (1/(L+1))^2 and the user-mean 1/nu into the single (1, D) row.
    inv_cnt = 1.0 / float(n_layers + 1)
    u_row = jnp.sum(acc[:nu, :], axis=0, keepdims=True) * (inv_cnt * inv_cnt / nu)  # (1, D)
    i_blk = acc[nu:, :]                                                             # (ni, D)
    if ni_pad > ni:
        # Zero-pad the item block so the score row is a full 128-lane store.
        i_blk = jnp.concatenate(
            [i_blk, jnp.zeros((ni_pad - ni, d), jnp.float32)], axis=0)              # (ni_pad, D)

    row = lax.dot_general(u_row, i_blk, dim_tt,
                          preferred_element_type=jnp.float32)                       # (1, ni_pad)

    # sigmoid(scores): lane-dense padded row; wrapper slices [:, :ni].
    probs_ref[...] = jax.nn.sigmoid(row)

    # nn.BCELoss(scores, labels), mean reduction.  Batch mean of labels was
    # folded in the wrapper (the score row is batch-invariant); stable
    # log-sigmoid identities make PyTorch's -100 clamp vacuous here.
    ybar = ybar_ref[...]                                 # (1, ni_pad), zero padded
    log_p = _log_sigmoid(row)
    log_1mp = _log_sigmoid(-row)
    bce = -(ybar * log_p + (1.0 - ybar) * log_1mp)       # (1, ni_pad)
    if ni_pad > ni:
        col = lax.broadcasted_iota(jnp.int32, (1, ni_pad), 1)
        bce = jnp.where(col < ni, bce, 0.0)
    loss_ref[0, 0] = jnp.sum(bce) * (1.0 / ni)


# ---------------------------------------------------------------------------
# Module wrapper (glue in plain JAX)
# ---------------------------------------------------------------------------
def basic_ngcf_forward(user_emb, item_emb, w1, b1, w2, b2, labels, n_layers):
    n_users, _ = user_emb.shape
    n_items = item_emb.shape[0]
    batch = labels.shape[0]
    ni_pad = max(128, -(-n_items // 128) * 128)

    # Symmetric normalization value of the all-ones bipartite adjacency
    # (no self loops): every nonzero entry of norm_adj equals this value.
    adj_val = float(1.0 / ((n_users * n_items) ** 0.5))

    # PyTorch Linear weights are (out, in); transpose ONCE to (in, out) so the
    # kernel's matmuls contract (1,)x(0,) with no implicit RHS transpose.
    w1_t = jnp.swapaxes(w1, -1, -2)
    w2_t = jnp.swapaxes(w2, -1, -2)

    # Fold the batch mean of the labels outside the kernel (mathematically
    # identical: the score row is identical across the batch) and zero-pad to
    # the lane-dense width used by the kernel.
    y_bar = jnp.mean(labels.astype(jnp.float32), axis=0, keepdims=True)
    y_bar = jnp.pad(y_bar, ((0, 0), (0, ni_pad - n_items)))

    kernel = functools.partial(
        ngcf_fused_kernel,
        nu=n_users, ni=n_items, ni_pad=ni_pad,
        n_layers=n_layers, adj_val=adj_val, neg_slope=0.01)

    vmem = pl.BlockSpec(memory_space=pltpu.MemorySpace.VMEM)
    smem = pl.BlockSpec(memory_space=pltpu.MemorySpace.SMEM)

    probs_pad, loss = pl.pallas_call(
        kernel,
        out_shape=(
            jax.ShapeDtypeStruct((1, ni_pad), jnp.float32),  # sigmoid(scores), padded
            jax.ShapeDtypeStruct((1, 1), jnp.float32),       # BCE loss scalar
        ),
        in_specs=[vmem] * 7,
        out_specs=(vmem, smem),
    )(user_emb, item_emb, w1_t, b1, w2_t, b2, y_bar)

    probs_row = probs_pad[:, :n_items]                       # (1, ni)
    scores = jnp.broadcast_to(probs_row, (batch, n_items))
    # get_rerank_output applies sigmoid again to the already-sigmoided scores.
    logits = jnp.broadcast_to(jax.nn.sigmoid(probs_row), (batch, n_items))
    return {"logits": logits, "labels": labels, "loss": loss[0, 0], "scores": scores}


# ---------------------------------------------------------------------------
# Pure-JAX reference (mirrors the PyTorch module literally) for validation.
# ---------------------------------------------------------------------------
def ngcf_reference(user_emb, item_emb, w1, b1, w2, b2, labels, n_layers):
    hi = lax.Precision.HIGHEST
    nu, _ = user_emb.shape
    ni = item_emb.shape[0]
    batch = labels.shape[0]

    adj = jnp.zeros((nu + ni, nu + ni), jnp.float32)
    adj = adj.at[:nu, nu:].set(1.0).at[nu:, :nu].set(1.0)
    rowsum = adj.sum(1)
    d_inv_sqrt = jnp.where(rowsum > 0, rowsum ** -0.5, 0.0)
    norm_adj = d_inv_sqrt[:, None] * adj * d_inv_sqrt[None, :]

    all_emb = jnp.concatenate([user_emb, item_emb], axis=0)
    emb_list = [all_emb]
    for l in range(n_layers):
        side = jnp.dot(norm_adj, all_emb, precision=hi)
        s = jax.nn.leaky_relu(jnp.dot(side, w1[l].T, precision=hi) + b1[l], 0.01)
        bi = jax.nn.leaky_relu(jnp.dot(all_emb * side, w2[l].T, precision=hi) + b2[l], 0.01)
        all_emb = s + bi
        nrm = jnp.sqrt(jnp.sum(all_emb * all_emb, axis=1, keepdims=True))
        all_emb = all_emb / jnp.maximum(nrm, 1e-12)
        emb_list.append(all_emb)
    all_emb = jnp.mean(jnp.stack(emb_list), axis=0)
    ue, ie = all_emb[:nu], all_emb[nu:]
    scores = jnp.mean(jnp.dot(ue, ie.T, precision=hi), axis=0, keepdims=True)
    scores = jax.nn.sigmoid(scores)
    scores = jnp.broadcast_to(scores, (batch, ni))
    logits = jax.nn.sigmoid(scores)
    y = labels.astype(jnp.float32)
    log_p = jnp.maximum(jnp.log(scores), -100.0)
    log_1mp = jnp.maximum(jnp.log(1.0 - scores), -100.0)
    loss = jnp.mean(-(y * log_p + (1.0 - y) * log_1mp))
    return scores, logits, loss


if __name__ == "__main__":
    # Small shapes consistent with the module.
    max_hist_len = 16    # n_users in the NGCF graph
    max_list_len = 8     # n_items in the NGCF graph
    embed_dim = 32
    n_layers = 2
    batch = 4

    key = jax.random.PRNGKey(0)
    k_user, k_item, k_w1, k_b1, k_w2, k_b2, k_lbl = jax.random.split(key, 7)

    # embedding_dict parameters (torch.randn equivalents), deterministic.
    user_emb = jax.random.normal(k_user, (max_hist_len, embed_dim), dtype=jnp.float32)
    item_emb = jax.random.normal(k_item, (max_list_len, embed_dim), dtype=jnp.float32)

    # Per-layer W1/W2 Linear params, PyTorch (out, in) layout; biases as (L,1,D).
    lim = 1.0 / (embed_dim ** 0.5)
    w1 = jax.random.uniform(k_w1, (n_layers, embed_dim, embed_dim), jnp.float32, -lim, lim)
    b1 = jax.random.uniform(k_b1, (n_layers, 1, embed_dim), jnp.float32, -lim, lim)
    w2 = jax.random.uniform(k_w2, (n_layers, embed_dim, embed_dim), jnp.float32, -lim, lim)
    b2 = jax.random.uniform(k_b2, (n_layers, 1, embed_dim), jnp.float32, -lim, lim)

    # lb_list labels, shape (batch, max_list_len), binary.
    labels = jax.random.bernoulli(k_lbl, 0.5, (batch, max_list_len)).astype(jnp.float32)

    out = basic_ngcf_forward(user_emb, item_emb, w1, b1, w2, b2, labels, n_layers)
    jax.block_until_ready(out)

    assert out["logits"].shape == (batch, max_list_len)
    assert out["scores"].shape == (batch, max_list_len)
    assert out["loss"].shape == ()

    # Validate against the literal (dense norm_adj) reference.
    ref_scores, ref_logits, ref_loss = ngcf_reference(
        user_emb, item_emb, w1, b1, w2, b2, labels, n_layers)
    np.testing.assert_allclose(np.asarray(out["scores"]), np.asarray(ref_scores),
                               rtol=1e-3, atol=1e-3)
    np.testing.assert_allclose(np.asarray(out["logits"]), np.asarray(ref_logits),
                               rtol=1e-3, atol=1e-3)
    np.testing.assert_allclose(np.asarray(out["loss"]), np.asarray(ref_loss),
                               rtol=1e-3, atol=1e-3)

    print("KERNEL_OK")
</pallas_src>

<mosaic_0001>
module attributes {stable_mosaic.version = 11 : i64} {
  func.func @ngcf_fused_kernel(%arg0: memref<16x32xf32, #tpu.memory_space<vmem>>, %arg1: memref<8x32xf32, #tpu.memory_space<vmem>>, %arg2: memref<2x32x32xf32, #tpu.memory_space<vmem>>, %arg3: memref<2x1x32xf32, #tpu.memory_space<vmem>>, %arg4: memref<2x32x32xf32, #tpu.memory_space<vmem>>, %arg5: memref<2x1x32xf32, #tpu.memory_space<vmem>>, %arg6: memref<1x128xf32, #tpu.memory_space<vmem>>, %arg7: memref<1x128xf32, #tpu.memory_space<vmem>>, %arg8: memref<1x1xf32, #tpu.memory_space<smem>>) attributes {dimension_semantics = [], scalar_prefetch = 0 : i64, scratch_operands = 0 : i64, tpu.core_type = #tpu.core_type<tc>} {
    %c0 = arith.constant 0 : index
    %c0_0 = arith.constant 0 : index
    %0 = vector.load %arg0[%c0, %c0_0] : memref<16x32xf32, #tpu.memory_space<vmem>>, vector<16x32xf32>
    %c0_1 = arith.constant 0 : index
    %c0_2 = arith.constant 0 : index
    %1 = vector.load %arg1[%c0_1, %c0_2] : memref<8x32xf32, #tpu.memory_space<vmem>>, vector<8x32xf32>
    %2 = tpu.concatenate %0, %1 in 0 : vector<16x32xf32>, vector<8x32xf32> -> vector<24x32xf32>
    %3 = tpu.iota {dimensions = array<i32: 0>} : vector<24x1xi32>
    %c16_i32 = arith.constant 16 : i32
    %4 = vector.broadcast %c16_i32 : i32 to vector<24x1xi32>
    %5 = arith.cmpi slt, %3, %4 : vector<24x1xi32>
    %c0_3 = arith.constant 0 : index
    %c0_4 = arith.constant 0 : index
    %c0_5 = arith.constant 0 : index
    %6 = vector.load %arg2[%c0_3, %c0_4, %c0_5] : memref<2x32x32xf32, #tpu.memory_space<vmem>>, vector<1x32x32xf32>
    %7 = vector.shape_cast %6 : vector<1x32x32xf32> to vector<32x32xf32>
    %c0_6 = arith.constant 0 : index
    %c0_7 = arith.constant 0 : index
    %c0_8 = arith.constant 0 : index
    %8 = vector.load %arg3[%c0_6, %c0_7, %c0_8] : memref<2x1x32xf32, #tpu.memory_space<vmem>>, vector<1x1x32xf32>
    %9 = vector.shape_cast %8 : vector<1x1x32xf32> to vector<1x32xf32>
    %c0_9 = arith.constant 0 : index
    %c0_10 = arith.constant 0 : index
    %c0_11 = arith.constant 0 : index
    %10 = vector.load %arg4[%c0_9, %c0_10, %c0_11] : memref<2x32x32xf32, #tpu.memory_space<vmem>>, vector<1x32x32xf32>
    %11 = vector.shape_cast %10 : vector<1x32x32xf32> to vector<32x32xf32>
    %c0_12 = arith.constant 0 : index
    %c0_13 = arith.constant 0 : index
    %c0_14 = arith.constant 0 : index
    %12 = vector.load %arg5[%c0_12, %c0_13, %c0_14] : memref<2x1x32xf32, #tpu.memory_space<vmem>>, vector<1x1x32xf32>
    %13 = vector.shape_cast %12 : vector<1x1x32xf32> to vector<1x32xf32>
    %14 = vector.extract_strided_slice %2 {offsets = [16, 0], sizes = [8, 32], strides = [1, 1]} : vector<24x32xf32> to vector<8x32xf32>
    %cst = arith.constant dense<0.000000e+00> : vector<32xf32>
    %15 = vector.multi_reduction <add>, %14, %cst [0] : vector<8x32xf32> to vector<32xf32>
    %16 = vector.shape_cast %15 : vector<32xf32> to vector<1x32xf32>
    %cst_15 = arith.constant 0.0883883461 : f32
    %17 = vector.broadcast %cst_15 : f32 to vector<1x32xf32>
    %18 = arith.mulf %17, %16 : vector<1x32xf32>
    %19 = vector.extract_strided_slice %2 {offsets = [0, 0], sizes = [16, 32], strides = [1, 1]} : vector<24x32xf32> to vector<16x32xf32>
    %cst_16 = arith.constant dense<0.000000e+00> : vector<32xf32>
    %20 = vector.multi_reduction <add>, %19, %cst_16 [0] : vector<16x32xf32> to vector<32xf32>
    %21 = vector.shape_cast %20 : vector<32xf32> to vector<1x32xf32>
    %cst_17 = arith.constant 0.0883883461 : f32
    %22 = vector.broadcast %cst_17 : f32 to vector<1x32xf32>
    %23 = arith.mulf %22, %21 : vector<1x32xf32>
    %24 = vector.shape_cast %5 : vector<24x1xi1> to vector<24x1xi1>
    %25 = vector.broadcast %24 : vector<24x1xi1> to vector<24x32xi1>
    %26 = vector.shape_cast %18 : vector<1x32xf32> to vector<1x32xf32>
    %27 = vector.broadcast %26 : vector<1x32xf32> to vector<24x32xf32>
    %28 = vector.shape_cast %23 : vector<1x32xf32> to vector<1x32xf32>
    %29 = vector.broadcast %28 : vector<1x32xf32> to vector<24x32xf32>
    %30 = arith.select %25, %27, %29 : vector<24x32xi1>, vector<24x32xf32>
    %cst_18 = arith.constant dense<0.000000e+00> : vector<24x32xf32>
    %31 = tpu.matmul %30, %7, %cst_18 {dimension_numbers = #tpu.dot_dimension_numbers<[1], [0], [0], [1], [0, 0, 1, 1], [], []>} : vector<24x32xf32>, vector<32x32xf32>, vector<24x32xf32> -> vector<24x32xf32>
    %32 = vector.broadcast %9 : vector<1x32xf32> to vector<24x32xf32>
    %33 = arith.addf %31, %32 : vector<24x32xf32>
    %cst_19 = arith.constant 0.000000e+00 : f32
    %34 = vector.broadcast %cst_19 : f32 to vector<24x32xf32>
    %35 = arith.cmpf oge, %33, %34 : vector<24x32xf32>
    %cst_20 = arith.constant 0.00999999977 : f32
    %36 = vector.broadcast %cst_20 : f32 to vector<24x32xf32>
    %37 = arith.mulf %36, %33 : vector<24x32xf32>
    %38 = arith.select %35, %33, %37 : vector<24x32xi1>, vector<24x32xf32>
    %39 = arith.mulf %2, %30 : vector<24x32xf32>
    %cst_21 = arith.constant dense<0.000000e+00> : vector<24x32xf32>
    %40 = tpu.matmul %39, %11, %cst_21 {dimension_numbers = #tpu.dot_dimension_numbers<[1], [0], [0], [1], [0, 0, 1, 1], [], []>} : vector<24x32xf32>, vector<32x32xf32>, vector<24x32xf32> -> vector<24x32xf32>
    %41 = vector.broadcast %13 : vector<1x32xf32> to vector<24x32xf32>
    %42 = arith.addf %40, %41 : vector<24x32xf32>
    %cst_22 = arith.constant 0.000000e+00 : f32
    %43 = vector.broadcast %cst_22 : f32 to vector<24x32xf32>
    %44 = arith.cmpf oge, %42, %43 : vector<24x32xf32>
    %cst_23 = arith.constant 0.00999999977 : f32
    %45 = vector.broadcast %cst_23 : f32 to vector<24x32xf32>
    %46 = arith.mulf %45, %42 : vector<24x32xf32>
    %47 = arith.select %44, %42, %46 : vector<24x32xi1>, vector<24x32xf32>
    %48 = arith.addf %38, %47 : vector<24x32xf32>
    %49 = arith.mulf %48, %48 : vector<24x32xf32>
    %cst_24 = arith.constant dense<0.000000e+00> : vector<24xf32>
    %50 = vector.multi_reduction <add>, %49, %cst_24 [1] : vector<24x32xf32> to vector<24xf32>
    %51 = vector.shape_cast %50 : vector<24xf32> to vector<24x1xf32>
    %cst_25 = arith.constant 1.000000e-24 : f32
    %52 = vector.broadcast %cst_25 : f32 to vector<24x1xf32>
    %53 = arith.maximumf %51, %52 : vector<24x1xf32>
    %54 = math.rsqrt %53 : vector<24x1xf32>
    %55 = vector.broadcast %54 : vector<24x1xf32> to vector<24x32xf32>
    %56 = arith.mulf %48, %55 : vector<24x32xf32>
    %57 = arith.addf %2, %56 : vector<24x32xf32>
    %c1 = arith.constant 1 : index
    %c0_26 = arith.constant 0 : index
    %c0_27 = arith.constant 0 : index
    %58 = vector.load %arg2[%c1, %c0_26, %c0_27] : memref<2x32x32xf32, #tpu.memory_space<vmem>>, vector<1x32x32xf32>
    %59 = vector.shape_cast %58 : vector<1x32x32xf32> to vector<32x32xf32>
    %c1_28 = arith.constant 1 : index
    %c0_29 = arith.constant 0 : index
    %c0_30 = arith.constant 0 : index
    %60 = vector.load %arg3[%c1_28, %c0_29, %c0_30] : memref<2x1x32xf32, #tpu.memory_space<vmem>>, vector<1x1x32xf32>
    %61 = vector.shape_cast %60 : vector<1x1x32xf32> to vector<1x32xf32>
    %c1_31 = arith.constant 1 : index
    %c0_32 = arith.constant 0 : index
    %c0_33 = arith.constant 0 : index
    %62 = vector.load %arg4[%c1_31, %c0_32, %c0_33] : memref<2x32x32xf32, #tpu.memory_space<vmem>>, vector<1x32x32xf32>
    %63 = vector.shape_cast %62 : vector<1x32x32xf32> to vector<32x32xf32>
    %c1_34 = arith.constant 1 : index
    %c0_35 = arith.constant 0 : index
    %c0_36 = arith.constant 0 : index
    %64 = vector.load %arg5[%c1_34, %c0_35, %c0_36] : memref<2x1x32xf32, #tpu.memory_space<vmem>>, vector<1x1x32xf32>
    %65 = vector.shape_cast %64 : vector<1x1x32xf32> to vector<1x32xf32>
    %66 = vector.extract_strided_slice %56 {offsets = [16, 0], sizes = [8, 32], strides = [1, 1]} : vector<24x32xf32> to vector<8x32xf32>
    %cst_37 = arith.constant dense<0.000000e+00> : vector<32xf32>
    %67 = vector.multi_reduction <add>, %66, %cst_37 [0] : vector<8x32xf32> to vector<32xf32>
    %68 = vector.shape_cast %67 : vector<32xf32> to vector<1x32xf32>
    %cst_38 = arith.constant 0.0883883461 : f32
    %69 = vector.broadcast %cst_38 : f32 to vector<1x32xf32>
    %70 = arith.mulf %69, %68 : vector<1x32xf32>
    %71 = vector.extract_strided_slice %56 {offsets = [0, 0], sizes = [16, 32], strides = [1, 1]} : vector<24x32xf32> to vector<16x32xf32>
    %cst_39 = arith.constant dense<0.000000e+00> : vector<32xf32>
    %72 = vector.multi_reduction <add>, %71, %cst_39 [0] : vector<16x32xf32> to vector<32xf32>
    %73 = vector.shape_cast %72 : vector<32xf32> to vector<1x32xf32>
    %cst_40 = arith.constant 0.0883883461 : f32
    %74 = vector.broadcast %cst_40 : f32 to vector<1x32xf32>
    %75 = arith.mulf %74, %73 : vector<1x32xf32>
    %76 = vector.shape_cast %5 : vector<24x1xi1> to vector<24x1xi1>
    %77 = vector.broadcast %76 : vector<24x1xi1> to vector<24x32xi1>
    %78 = vector.shape_cast %70 : vector<1x32xf32> to vector<1x32xf32>
    %79 = vector.broadcast %78 : vector<1x32xf32> to vector<24x32xf32>
    %80 = vector.shape_cast %75 : vector<1x32xf32> to vector<1x32xf32>
    %81 = vector.broadcast %80 : vector<1x32xf32> to vector<24x32xf32>
    %82 = arith.select %77, %79, %81 : vector<24x32xi1>, vector<24x32xf32>
    %cst_41 = arith.constant dense<0.000000e+00> : vector<24x32xf32>
    %83 = tpu.matmul %82, %59, %cst_41 {dimension_numbers = #tpu.dot_dimension_numbers<[1], [0], [0], [1], [0, 0, 1, 1], [], []>} : vector<24x32xf32>, vector<32x32xf32>, vector<24x32xf32> -> vector<24x32xf32>
    %84 = vector.broadcast %61 : vector<1x32xf32> to vector<24x32xf32>
    %85 = arith.addf %83, %84 : vector<24x32xf32>
    %cst_42 = arith.constant 0.000000e+00 : f32
    %86 = vector.broadcast %cst_42 : f32 to vector<24x32xf32>
    %87 = arith.cmpf oge, %85, %86 : vector<24x32xf32>
    %cst_43 = arith.constant 0.00999999977 : f32
    %88 = vector.broadcast %cst_43 : f32 to vector<24x32xf32>
    %89 = arith.mulf %88, %85 : vector<24x32xf32>
    %90 = arith.select %87, %85, %89 : vector<24x32xi1>, vector<24x32xf32>
    %91 = arith.mulf %56, %82 : vector<24x32xf32>
    %cst_44 = arith.constant dense<0.000000e+00> : vector<24x32xf32>
    %92 = tpu.matmul %91, %63, %cst_44 {dimension_numbers = #tpu.dot_dimension_numbers<[1], [0], [0], [1], [0, 0, 1, 1], [], []>} : vector<24x32xf32>, vector<32x32xf32>, vector<24x32xf32> -> vector<24x32xf32>
    %93 = vector.broadcast %65 : vector<1x32xf32> to vector<24x32xf32>
    %94 = arith.addf %92, %93 : vector<24x32xf32>
    %cst_45 = arith.constant 0.000000e+00 : f32
    %95 = vector.broadcast %cst_45 : f32 to vector<24x32xf32>
    %96 = arith.cmpf oge, %94, %95 : vector<24x32xf32>
    %cst_46 = arith.constant 0.00999999977 : f32
    %97 = vector.broadcast %cst_46 : f32 to vector<24x32xf32>
    %98 = arith.mulf %97, %94 : vector<24x32xf32>
    %99 = arith.select %96, %94, %98 : vector<24x32xi1>, vector<24x32xf32>
    %100 = arith.addf %90, %99 : vector<24x32xf32>
    %101 = arith.mulf %100, %100 : vector<24x32xf32>
    %cst_47 = arith.constant dense<0.000000e+00> : vector<24xf32>
    %102 = vector.multi_reduction <add>, %101, %cst_47 [1] : vector<24x32xf32> to vector<24xf32>
    %103 = vector.shape_cast %102 : vector<24xf32> to vector<24x1xf32>
    %cst_48 = arith.constant 1.000000e-24 : f32
    %104 = vector.broadcast %cst_48 : f32 to vector<24x1xf32>
    %105 = arith.maximumf %103, %104 : vector<24x1xf32>
    %106 = math.rsqrt %105 : vector<24x1xf32>
    %107 = vector.broadcast %106 : vector<24x1xf32> to vector<24x32xf32>
    %108 = arith.mulf %100, %107 : vector<24x32xf32>
    %109 = arith.addf %57, %108 : vector<24x32xf32>
    %110 = vector.extract_strided_slice %109 {offsets = [0, 0], sizes = [16, 32], strides = [1, 1]} : vector<24x32xf32> to vector<16x32xf32>
    %cst_49 = arith.constant dense<0.000000e+00> : vector<32xf32>
    %111 = vector.multi_reduction <add>, %110, %cst_49 [0] : vector<16x32xf32> to vector<32xf32>
    %112 = vector.shape_cast %111 : vector<32xf32> to vector<1x32xf32>
    %cst_50 = arith.constant 0.0069444445 : f32
    %113 = vector.broadcast %cst_50 : f32 to vector<1x32xf32>
    %114 = arith.mulf %112, %113 : vector<1x32xf32>
    %115 = vector.extract_strided_slice %109 {offsets = [16, 0], sizes = [8, 32], strides = [1, 1]} : vector<24x32xf32> to vector<8x32xf32>
    %cst_51 = arith.constant 0.000000e+00 : f32
    %116 = vector.broadcast %cst_51 : f32 to vector<120x32xf32>
    %117 = tpu.concatenate %115, %116 in 0 : vector<8x32xf32>, vector<120x32xf32> -> vector<128x32xf32>
    %cst_52 = arith.constant dense<0.000000e+00> : vector<1x128xf32>
    %118 = tpu.matmul %114, %117, %cst_52 {dimension_numbers = #tpu.dot_dimension_numbers<[1], [1], [0], [0], [0, 0, 1, 0], [], []>} : vector<1x32xf32>, vector<128x32xf32>, vector<1x128xf32> -> vector<1x128xf32>
    %119 = arith.negf %118 : vector<1x128xf32>
    %120 = math.exp %119 : vector<1x128xf32>
    %cst_53 = arith.constant 1.000000e+00 : f32
    %121 = vector.broadcast %cst_53 : f32 to vector<1x128xf32>
    %122 = arith.addf %121, %120 : vector<1x128xf32>
    %123 = arith.divf %121, %122 : vector<1x128xf32>
    %c0_54 = arith.constant 0 : index
    %c0_55 = arith.constant 0 : index
    %124 = vector.load %arg7[%c0_54, %c0_55] : memref<1x128xf32, #tpu.memory_space<vmem>>, vector<1x128xf32>
    tpu.vector_store %arg7[%c0_54, %c0_55], %123 {strides = array<i32>} : memref<1x128xf32, #tpu.memory_space<vmem>>, vector<1x128xf32>,
    %c0_56 = arith.constant 0 : index
    %c0_57 = arith.constant 0 : index
    %125 = vector.load %arg6[%c0_56, %c0_57] : memref<1x128xf32, #tpu.memory_space<vmem>>, vector<1x128xf32>
    %cst_58 = arith.constant 0.000000e+00 : f32
    %126 = vector.broadcast %cst_58 : f32 to vector<1x128xf32>
    %127 = arith.minimumf %118, %126 : vector<1x128xf32>
    %128 = math.absf %118 : vector<1x128xf32>
    %cst_59 = arith.constant 0.000000e+00 : f32
    %129 = vector.broadcast %cst_59 : f32 to vector<1x128xf32>
    %130 = arith.subf %129, %128 : vector<1x128xf32>
    %131 = math.exp %130 : vector<1x128xf32>
    %132 = math.log1p %131 : vector<1x128xf32>
    %133 = arith.subf %127, %132 : vector<1x128xf32>
    %cst_60 = arith.constant 0.000000e+00 : f32
    %134 = vector.broadcast %cst_60 : f32 to vector<1x128xf32>
    %135 = arith.subf %134, %118 : vector<1x128xf32>
    %cst_61 = arith.constant 0.000000e+00 : f32
    %136 = vector.broadcast %cst_61 : f32 to vector<1x128xf32>
    %137 = arith.minimumf %135, %136 : vector<1x128xf32>
    %138 = math.absf %135 : vector<1x128xf32>
    %cst_62 = arith.constant 0.000000e+00 : f32
    %139 = vector.broadcast %cst_62 : f32 to vector<1x128xf32>
    %140 = arith.subf %139, %138 : vector<1x128xf32>
    %141 = math.exp %140 : vector<1x128xf32>
    %142 = math.log1p %141 : vector<1x128xf32>
    %143 = arith.subf %137, %142 : vector<1x128xf32>
    %144 = arith.mulf %125, %133 : vector<1x128xf32>
    %cst_63 = arith.constant 1.000000e+00 : f32
    %145 = vector.broadcast %cst_63 : f32 to vector<1x128xf32>
    %146 = arith.subf %145, %125 : vector<1x128xf32>
    %147 = arith.mulf %146, %143 : vector<1x128xf32>
    %148 = arith.addf %144, %147 : vector<1x128xf32>
    %cst_64 = arith.constant 0.000000e+00 : f32
    %149 = vector.broadcast %cst_64 : f32 to vector<1x128xf32>
    %150 = arith.subf %149, %148 : vector<1x128xf32>
    %151 = tpu.iota {dimensions = array<i32: 1>} : vector<1x128xi32>
    %c8_i32 = arith.constant 8 : i32
    %152 = vector.broadcast %c8_i32 : i32 to vector<1x128xi32>
    %153 = arith.cmpi slt, %151, %152 : vector<1x128xi32>
    %cst_65 = arith.constant 0.000000e+00 : f32
    %154 = vector.broadcast %cst_65 : f32 to vector<1x128xf32>
    %155 = arith.select %153, %150, %154 : vector<1x128xi1>, vector<1x128xf32>
    %156 = vector.shape_cast %155 : vector<1x128xf32> to vector<1x1x128xf32>
    %cst_66 = arith.constant dense<0.000000e+00> : vector<1xf32>
    %157 = vector.multi_reduction <add>, %156, %cst_66 [1, 2] : vector<1x1x128xf32> to vector<1xf32>
    %158 = vector.shape_cast %157 : vector<1xf32> to vector<1x1x1xf32>
    %159 = vector.extract %158[0, 0, 0] : f32 from vector<1x1x1xf32>
    %cst_67 = arith.constant 1.250000e-01 : f32
    %160 = arith.mulf %159, %cst_67 : f32
    %c0_68 = arith.constant 0 : index
    %c0_69 = arith.constant 0 : index
    %161 = memref.load %arg8[%c0_68, %c0_69] : memref<1x1xf32, #tpu.memory_space<smem>>
    memref.store %160, %arg8[%c0_68, %c0_69] : memref<1x1xf32, #tpu.memory_space<smem>>
    return
  }
}

</mosaic_0001>

<llo_original>
// kernel: tpu_custom_call.1
$region0: #{tpu_custom_call.1}
  #allocation0 [shape = 'u32[]', space=smem, size = 0x4, offset = 0x4, fixed_abs, tag = 'smem constant byte address 0x4 - core index']
  #allocation1 [shape = 'u32[144,128]{1,0:T(1,128)}', space=vmem, size = 0x12000, scoped, tag = 'internal scratch']
  %s0 = inlined_call_operand.hbm [shape: f32[16,32], index: 0, kind: input, shape index: {}]
  %s1 = inlined_call_operand.hbm [shape: f32[8,32], index: 1, kind: input, shape index: {}]
  %s2 = inlined_call_operand.hbm [shape: f32[2,32,32], index: 2, kind: input, shape index: {}]
  %s3 = inlined_call_operand.vmem [shape: f32[2,1,32], index: 3, kind: input, shape index: {}]
  %s4 = inlined_call_operand.hbm [shape: f32[2,32,32], index: 4, kind: input, shape index: {}]
  %s5 = inlined_call_operand.vmem [shape: f32[2,1,32], index: 5, kind: input, shape index: {}]
  %s6 = inlined_call_operand.vmem [shape: f32[1,128], index: 6, kind: input, shape index: {}]
  %s7 = inlined_call_operand.hbm [shape: f32[1,128], index: 7, kind: output, shape index: {0}]
  %s8 = inlined_call_operand.hbm [shape: f32[1,1], index: 8, kind: output, shape index: {1}]
  %9 = xla_tuple %s7, %s8
  %s10 = sld [smem:[#allocation0]]
  $region62: #{tpu_custom_call.1} parent=0
    _
  %s12 = ssub.s32 1, %s10
  %s13 = scalar_select 0, %s12, %s10
  $region1: #{tpu_custom_call.1} parent=0
    #allocation2 [shape = 'u8[8192]{0}', space=vmem, size = 0x2000, scoped, tag = 'input window, operand 0, single buffered']
    #allocation3 [shape = 's32[1]{0}', space=sflag, size = 0x4, scoped, tag = 'scoped memory for tpu_custom_call.1']
    #allocation4 [shape = 's32[1]{0}', space=sflag, size = 0x4, scoped, tag = 'scoped memory for tpu_custom_call.1']
    #allocation5 [shape = 's32[1]{0}', space=sflag, size = 0x4, scoped, tag = 'scoped memory for tpu_custom_call.1']
    #allocation6 [shape = 'u8[4096]{0}', space=vmem, size = 0x1000, scoped, tag = 'input window, operand 1, single buffered']
    #allocation7 [shape = 's32[1]{0}', space=sflag, size = 0x4, scoped, tag = 'scoped memory for tpu_custom_call.1']
    #allocation8 [shape = 'u8[32768]{0}', space=vmem, size = 0x8000, scoped, tag = 'input window, operand 2, single buffered']
    #allocation9 [shape = 'u8[32768]{0}', space=vmem, size = 0x8000, scoped, tag = 'input window, operand 4, single buffered']
    #allocation10 [shape = 's32[1]{0}', space=sflag, size = 0x4, scoped, tag = 'scoped memory for tpu_custom_call.1']
    #allocation11 [shape = 'u8[512]{0}', space=vmem, size = 0x400, scoped, tag = 'output window, operand 0, single buffered']
    #allocation12 [shape = 'u8[512]{0}', space=smem, size = 0x200, scoped, tag = 'output window, operand 1, single buffered']
    %14 = vsyncpa [#allocation3], 0
    %15 = vsyncpa [#allocation7], 0
    %16 = vsyncpa [#allocation10], 0
    %17 = vsyncpa [#allocation4], 0
    %18 = vsyncpa [#allocation5], 0
    // Predicated region
    $region2: #{tpu_custom_call.1} parent=1 // pred_check
      _
    $region3: #{tpu_custom_call.1} parent=1 // pred_check_branch
      %20 = sbr.rel (0) target = $region5
    $region4: #{tpu_custom_call.1} parent=1 // pred_region
      %s22 = ssub.s32 256, 256
      %23 = vsyncadd [#allocation3], %s22
      %s24 = sshll.u32 [#allocation2], 4
      %s25 = int_to_ptr.vmem [resolvable:$true] %s24
      %30 = dma.hbm_to_vmem [thread:$0]  %s0, 256, %s25, [#allocation3], 128, 128, 8
    $region5: #{tpu_custom_call.1} parent=1 // pred_fallthru
      _
    // Predicated region
    $region6: #{tpu_custom_call.1} parent=1 // pred_check
      _
    $region7: #{tpu_custom_call.1} parent=1 // pred_check_branch
      %32 = sbr.rel (0) target = $region9
    $region8: #{tpu_custom_call.1} parent=1 // pred_region
      %s34 = ssub.s32 128, 128
      %35 = vsyncadd [#allocation7], %s34
      %s37 = sshll.u32 [#allocation6], 4
      %s38 = int_to_ptr.vmem [resolvable:$true] %s37
      %40 = dma.hbm_to_vmem [thread:$0]  %s1, 128, %s38, [#allocation7]
    $region9: #{tpu_custom_call.1} parent=1 // pred_fallthru
      _
    // Predicated region
    $region10: #{tpu_custom_call.1} parent=1 // pred_check
      _
    $region11: #{tpu_custom_call.1} parent=1 // pred_check_branch
      %42 = sbr.rel (0) target = $region13
    $region12: #{tpu_custom_call.1} parent=1 // pred_region
      %s44 = ssub.s32 1024, 1024
      %45 = vsyncadd [#allocation7], %s44
      %s46 = sshll.u32 [#allocation8], 4
      %s47 = int_to_ptr.vmem [resolvable:$true] %s46
      %52 = dma.hbm_to_vmem [thread:$0]  %s2, 1024, %s47, [#allocation7], 128, 128, 8
    $region13: #{tpu_custom_call.1} parent=1 // pred_fallthru
      _
    // Predicated region
    $region14: #{tpu_custom_call.1} parent=1 // pred_check
      _
    $region15: #{tpu_custom_call.1} parent=1 // pred_check_branch
      %54 = sbr.rel (0) target = $region17
    $region16: #{tpu_custom_call.1} parent=1 // pred_region
      _
    $region17: #{tpu_custom_call.1} parent=1 // pred_fallthru
      _
    // Predicated region
    $region18: #{tpu_custom_call.1} parent=1 // pred_check
      _
    $region19: #{tpu_custom_call.1} parent=1 // pred_check_branch
      %56 = sbr.rel (0) target = $region21
    $region20: #{tpu_custom_call.1} parent=1 // pred_region
      %s58 = ssub.s32 1024, 1024
      %59 = vsyncadd [#allocation10], %s58
      %s60 = sshll.u32 [#allocation9], 4
      %s61 = int_to_ptr.vmem [resolvable:$true] %s60
      %66 = dma.hbm_to_vmem [thread:$0]  %s4, 1024, %s61, [#allocation10], 128, 128, 8
    $region21: #{tpu_custom_call.1} parent=1 // pred_fallthru
      _
    // Predicated region
    $region22: #{tpu_custom_call.1} parent=1 // pred_check
      _
    $region23: #{tpu_custom_call.1} parent=1 // pred_check_branch
      %68 = sbr.rel (0) target = $region25
    $region24: #{tpu_custom_call.1} parent=1 // pred_region
      _
    $region25: #{tpu_custom_call.1} parent=1 // pred_fallthru
      _
    // Predicated region
    $region26: #{tpu_custom_call.1} parent=1 // pred_check
      _
    $region27: #{tpu_custom_call.1} parent=1 // pred_check_branch
      %70 = sbr.rel (0) target = $region29
    $region28: #{tpu_custom_call.1} parent=1 // pred_region
      _
    $region29: #{tpu_custom_call.1} parent=1 // pred_fallthru
      _
    // Predicated region
    $region30: #{tpu_custom_call.1} parent=1 // pred_check
      _
    $region31: #{tpu_custom_call.1} parent=1 // pred_check_branch
      %72 = sbr.rel (0) target = $region33
    $region32: #{tpu_custom_call.1} parent=1 // pred_region
      %73 = dma.done [#allocation3], 256
    $region33: #{tpu_custom_call.1} parent=1 // pred_fallthru
      _
    // Predicated region
    $region34: #{tpu_custom_call.1} parent=1 // pred_check
      _
    $region35: #{tpu_custom_call.1} parent=1 // pred_check_branch
      %75 = sbr.rel (0) target = $region37
    $region36: #{tpu_custom_call.1} parent=1 // pred_region
      %76 = dma.done [#allocation7], 128
    $region37: #{tpu_custom_call.1} parent=1 // pred_fallthru
      _
    // Predicated region
    $region38: #{tpu_custom_call.1} parent=1 // pred_check
      _
    $region39: #{tpu_custom_call.1} parent=1 // pred_check_branch
      %78 = sbr.rel (0) target = $region41
    $region40: #{tpu_custom_call.1} parent=1 // pred_region
      %79 = dma.done [#allocation7], 1024
    $region41: #{tpu_custom_call.1} parent=1 // pred_fallthru
      _
    // Predicated region
    $region42: #{tpu_custom_call.1} parent=1 // pred_check
      _
    $region43: #{tpu_custom_call.1} parent=1 // pred_check_branch
      %81 = sbr.rel (0) target = $region45
    $region44: #{tpu_custom_call.1} parent=1 // pred_region
      %82 = dma.done [#allocation10], 1024
    $region45: #{tpu_custom_call.1} parent=1 // pred_fallthru
      _
    %v83 = vld [vmem:[#allocation2] sm:$0xff]
    %v84 = vld [vmem:[#allocation2 + $0x8] sm:$0xff]
    %v85 = vld [vmem:[#allocation6] sm:$0xff]
    %v86 = vlaneseq
    %v87 = vshrl.u32 %v86, 7
    %v88 = vadd.s32 %v87, 8
    %v89 = vadd.s32 %v87, 16
    %vm90 = vcmp.lt.s32.totalorder %v87, 16
    %vm91 = vcmp.lt.s32.totalorder %v88, 16
    %vm92 = vcmp.lt.s32.totalorder %v89, 16
    %v93 = vld [vmem:[#allocation8] sm:$0xff]
    %v94 = vld [vmem:[#allocation8 + $0x8] sm:$0xff]
    %v95 = vld [vmem:[#allocation8 + $0x10] sm:$0xff]
    %v96 = vld [vmem:[#allocation8 + $0x18] sm:$0xff]
    %v97 = vld [vmem:[%s3] sm:$0x1]
    %v98 = vld [vmem:[#allocation9] sm:$0xff]
    %v99 = vld [vmem:[#allocation9 + $0x8] sm:$0xff]
    %v100 = vld [vmem:[#allocation9 + $0x10] sm:$0xff]
    %v101 = vld [vmem:[#allocation9 + $0x18] sm:$0xff]
    %v102 = vld [vmem:[%s5] sm:$0x1]
    %vm103 = vcmask 261120
    %v104 = vsel %vm103, %v85, 0.0
    %v105 = vrot.slane %v104, 4
    %v106 = vadd.f32 %v104, %v105
    %v107 = vrot.slane %v106, 2
    %v108 = vadd.f32 %v106, %v107
    %v109 = vrot.slane %v108, 1
    %v110 = vadd.f32 %v108, %v109
    %v111 = vmul.f32 %v110, 0.088388346
    %v112 = vsel %vm103, %v83, 0.0
    %v113 = vsel %vm103, %v84, 0.0
    %v114 = vadd.f32 %v112, %v113
    %v115 = vrot.slane %v114, 4
    %v116 = vadd.f32 %v114, %v115
    %v117 = vrot.slane %v116, 2
    %v118 = vadd.f32 %v116, %v117
    %v119 = vrot.slane %v118, 1
    %v120 = vadd.f32 %v118, %v119
    %v121 = vmul.f32 %v120, 0.088388346
    %v122 = vsel %vm90, 1, 0
    %v123 = vsel %vm91, 1, 0
    %v124 = vsel %vm92, 1, 0
    %vm125 = vcmp.eq.s32.totalorder %v122, 1
    %vm126 = vcmp.eq.s32.totalorder %v123, 1
    %vm127 = vcmp.eq.s32.totalorder %v124, 1
    %v128 = vsel %vm125, %v111, %v121
    %v129 = vsel %vm126, %v111, %v121
    %v130 = vsel %vm127, %v111, %v121
    %v132 = vlaneseq
    %v133 = vshrl.u32 %v132, 7
    %v134 = vsub.s32 0, %v133
    %v135 = vrot.slane %v97, %v134
    %v138 = vsel %vm103, %v128, 0
    %v141 = vsel %vm103, %v129, 0
    %v144 = vsel %vm103, %v130, 0
    %146 = vmatprep.subr.mxu0 0.0
    %147 = vmatpush1.msra.mxu0 %v93
    %148 = vmatprep.subr.mxu0 0.0
    %149 = vmatpush1.msra.mxu0 %v94
    %150 = vmatprep.subr.mxu0 0.0
    %151 = vmatpush1.msra.mxu0 %v95
    %152 = vmatprep.subr.mxu0 0.0
    %153 = vmatpush1.msra.mxu0 %v96
    %154 = vmatprep.subr.mxu0 0.0
    %155 = vmatpush1.msra.mxu0 0.0
    %156 = vmatprep.subr.mxu0 0.0
    %157 = vmatpush1.msra.mxu0 0.0
    %158 = vmatprep.subr.mxu0 0.0
    %159 = vmatpush1.msra.mxu0 0.0
    %160 = vmatprep.subr.mxu0 0.0
    %161 = vmatpush1.msra.mxu0 0.0
    %162 = vmatprep.subr.mxu0 0.0
    %163 = vmatpush1.msra.mxu0 0.0
    %164 = vmatprep.subr.mxu0 0.0
    %165 = vmatpush1.msra.mxu0 0.0
    %166 = vmatprep.subr.mxu0 0.0
    %167 = vmatpush1.msra.mxu0 0.0
    %168 = vmatprep.subr.mxu0 0.0
    %169 = vmatpush1.msra.mxu0 0.0
    %170 = vmatprep.subr.mxu0 0.0
    %171 = vmatpush1.msra.mxu0 0.0
    %172 = vmatprep.subr.mxu0 0.0
    %173 = vmatpush1.msra.mxu0 0.0
    %174 = vmatprep.subr.mxu0 0.0
    %175 = vmatpush1.msra.mxu0 0.0
    %176 = vmatprep.subr.mxu0 0.0
    %177 = vmatpush1.msra.mxu0 0.0
    %178 = vmatprep.subr.mxu0 0.0
    %179 = vmatpush1.msra.mxu0 0.0
    %180 = vmatprep.subr.mxu0 0.0
    %181 = vmatpush1.msra.mxu0 0.0
    %182 = vmatprep.subr.mxu0 0.0
    %183 = vmatpush1.msra.mxu0 0.0
    %184 = vmatprep.subr.mxu0 0.0
    %185 = vmatpush1.msra.mxu0 0.0
    %186 = vmatprep.subr.mxu0 0.0
    %187 = vmatpush1.msra.mxu0 0.0
    %188 = vmatprep.subr.mxu0 0.0
    %189 = vmatpush1.msra.mxu0 0.0
    %190 = vmatprep.subr.mxu0 0.0
    %191 = vmatpush1.msra.mxu0 0.0
    %192 = vmatprep.subr.mxu0 0.0
    %193 = vmatpush1.msra.mxu0 0.0
    %194 = vmatprep.subr.mxu0 0.0
    %195 = vmatpush1.msra.mxu0 0.0
    %196 = vmatprep.subr.mxu0 0.0
    %197 = vmatpush1.msra.mxu0 0.0
    %198 = vmatprep.subr.mxu0 0.0
    %199 = vmatpush1.msra.mxu0 0.0
    %200 = vmatprep.subr.mxu0 0.0
    %201 = vmatpush1.msra.mxu0 0.0
    %202 = vmatprep.subr.mxu0 0.0
    %203 = vmatpush1.msra.mxu0 0.0
    %204 = vmatprep.subr.mxu0 0.0
    %205 = vmatpush1.msra.mxu0 0.0
    %206 = vmatprep.subr.mxu0 0.0
    %207 = vmatpush1.msra.mxu0 0.0
    %208 = vmatprep.subr.mxu0 0.0
    %209 = vmatpush1.msra.mxu0 0.0
    %210 = vmatprep.mubr.f32.mxu0 0.0
    %211 = vmatmul.mubr.f32.gmra.mrb[0].mxu0 %v138
    %v212 = vpop.f32.mrb[0].mxu0
    %v213 = vadd.f32 %v135, %v212
    %v214 = vpop.f32.mrb[0].mxu0
    %215 = vmatprep.mubr.f32.mxu0 0.0
    %216 = vmatmul.mubr.f32.gmra.mrb[0].mxu0 %v141
    %v217 = vpop.f32.mrb[0].mxu0
    %v218 = vadd.f32 %v135, %v217
    %v219 = vpop.f32.mrb[0].mxu0
    %220 = vmatprep.mubr.f32.mxu0 0.0
    %221 = vmatmul.mubr.f32.gmra.mrb[0].mxu0 %v144
    %v222 = vpop.f32.mrb[0].mxu0
    %v223 = vadd.f32 %v135, %v222
    %v224 = vpop.f32.mrb[0].mxu0
    %225 = vdwg.mxu0
    %vm226 = vcmp.ge.f32.partialorder %v213, 0.0
    %vm227 = vcmp.ge.f32.partialorder %v218, 0.0
    %vm228 = vcmp.ge.f32.partialorder %v223, 0.0
    %v229 = vmul.f32 %v213, 0.01
    %v230 = vmul.f32 %v218, 0.01
    %v231 = vmul.f32 %v223, 0.01
    %v232 = vsel %vm226, %v213, %v229
    %v233 = vsel %vm227, %v218, %v230
    %v234 = vsel %vm228, %v223, %v231
    %v235 = vmul.f32 %v83, %v128
    %v236 = vmul.f32 %v84, %v129
    %v237 = vmul.f32 %v85, %v130
    %v239 = vlaneseq
    %v240 = vshrl.u32 %v239, 7
    %v241 = vsub.s32 0, %v240
    %v242 = vrot.slane %v102, %v241
    %v245 = vsel %vm103, %v235, 0
    %v248 = vsel %vm103, %v236, 0
    %v251 = vsel %vm103, %v237, 0
    %253 = vmatprep.subr.mxu0 0.0
    %254 = vmatpush1.msra.mxu0 %v98
    %255 = vmatprep.subr.mxu0 0.0
    %256 = vmatpush1.msra.mxu0 %v99
    %257 = vmatprep.subr.mxu0 0.0
    %258 = vmatpush1.msra.mxu0 %v100
    %259 = vmatprep.subr.mxu0 0.0
    %260 = vmatpush1.msra.mxu0 %v101
    %261 = vmatprep.subr.mxu0 0.0
    %262 = vmatpush1.msra.mxu0 0.0
    %263 = vmatprep.subr.mxu0 0.0
    %264 = vmatpush1.msra.mxu0 0.0
    %265 = vmatprep.subr.mxu0 0.0
    %266 = vmatpush1.msra.mxu0 0.0
    %267 = vmatprep.subr.mxu0 0.0
    %268 = vmatpush1.msra.mxu0 0.0
    %269 = vmatprep.subr.mxu0 0.0
    %270 = vmatpush1.msra.mxu0 0.0
    %271 = vmatprep.subr.mxu0 0.0
    %272 = vmatpush1.msra.mxu0 0.0
    %273 = vmatprep.subr.mxu0 0.0
    %274 = vmatpush1.msra.mxu0 0.0
    %275 = vmatprep.subr.mxu0 0.0
    %276 = vmatpush1.msra.mxu0 0.0
    %277 = vmatprep.subr.mxu0 0.0
    %278 = vmatpush1.msra.mxu0 0.0
    %279 = vmatprep.subr.mxu0 0.0
    %280 = vmatpush1.msra.mxu0 0.0
    %281 = vmatprep.subr.mxu0 0.0
    %282 = vmatpush1.msra.mxu0 0.0
    %283 = vmatprep.subr.mxu0 0.0
    %284 = vmatpush1.msra.mxu0 0.0
    %285 = vmatprep.subr.mxu0 0.0
    %286 = vmatpush1.msra.mxu0 0.0
    %287 = vmatprep.subr.mxu0 0.0
    %288 = vmatpush1.msra.mxu0 0.0
    %289 = vmatprep.subr.mxu0 0.0
    %290 = vmatpush1.msra.mxu0 0.0
    %291 = vmatprep.subr.mxu0 0.0
    %292 = vmatpush1.msra.mxu0 0.0
    %293 = vmatprep.subr.mxu0 0.0
    %294 = vmatpush1.msra.mxu0 0.0
    %295 = vmatprep.subr.mxu0 0.0
    %296 = vmatpush1.msra.mxu0 0.0
    %297 = vmatprep.subr.mxu0 0.0
    %298 = vmatpush1.msra.mxu0 0.0
    %299 = vmatprep.subr.mxu0 0.0
    %300 = vmatpush1.msra.mxu0 0.0
    %301 = vmatprep.subr.mxu0 0.0
    %302 = vmatpush1.msra.mxu0 0.0
    %303 = vmatprep.subr.mxu0 0.0
    %304 = vmatpush1.msra.mxu0 0.0
    %305 = vmatprep.subr.mxu0 0.0
    %306 = vmatpush1.msra.mxu0 0.0
    %307 = vmatprep.subr.mxu0 0.0
    %308 = vmatpush1.msra.mxu0 0.0
    %309 = vmatprep.subr.mxu0 0.0
    %310 = vmatpush1.msra.mxu0 0.0
    %311 = vmatprep.subr.mxu0 0.0
    %312 = vmatpush1.msra.mxu0 0.0
    %313 = vmatprep.subr.mxu0 0.0
    %314 = vmatpush1.msra.mxu0 0.0
    %315 = vmatprep.subr.mxu0 0.0
    %316 = vmatpush1.msra.mxu0 0.0
    %317 = vmatprep.mubr.f32.mxu0 0.0
    %318 = vmatmul.mubr.f32.gmra.mrb[0].mxu0 %v245
    %v319 = vpop.f32.mrb[0].mxu0
    %v320 = vadd.f32 %v242, %v319
    %v321 = vpop.f32.mrb[0].mxu0
    %322 = vmatprep.mubr.f32.mxu0 0.0
    %323 = vmatmul.mubr.f32.gmra.mrb[0].mxu0 %v248
    %v324 = vpop.f32.mrb[0].mxu0
    %v325 = vadd.f32 %v242, %v324
    %v326 = vpop.f32.mrb[0].mxu0
    %327 = vmatprep.mubr.f32.mxu0 0.0
    %328 = vmatmul.mubr.f32.gmra.mrb[0].mxu0 %v251
    %v329 = vpop.f32.mrb[0].mxu0
    %v330 = vadd.f32 %v242, %v329
    %v331 = vpop.f32.mrb[0].mxu0
    %332 = vdwg.mxu0
    %vm333 = vcmp.ge.f32.partialorder %v320, 0.0
    %vm334 = vcmp.ge.f32.partialorder %v325, 0.0
    %vm335 = vcmp.ge.f32.partialorder %v330, 0.0
    %v336 = vmul.f32 %v320, 0.01
    %v337 = vmul.f32 %v325, 0.01
    %v338 = vmul.f32 %v330, 0.01
    %v339 = vsel %vm333, %v320, %v336
    %v340 = vsel %vm334, %v325, %v337
    %v341 = vsel %vm335, %v330, %v338
    %v342 = vadd.f32 %v232, %v339
    %v343 = vadd.f32 %v233, %v340
    %v344 = vadd.f32 %v234, %v341
    %v345 = vmul.f32 %v342, %v342
    %v346 = vmul.f32 %v343, %v343
    %v347 = vmul.f32 %v344, %v344
    %v348 = vsel %vm103, %v345, 0.0
    %349 = vadd.xlane.f32.xlu0 %v348
    %v350 = vpop.xlane.xlu0 %349
    %v351 = vsel %vm103, %v346, 0.0
    %352 = vadd.xlane.f32.xlu0 %v351
    %v353 = vpop.xlane.xlu0 %352
    %v354 = vsel %vm103, %v347, 0.0
    %355 = vadd.xlane.f32.xlu0 %v354
    %v356 = vpop.xlane.xlu0 %355
    %v357 = vmax.f32 %v350, 1e-24
    %v358 = vmax.f32 %v353, 1e-24
    %v359 = vmax.f32 %v356, 1e-24
    %v360 = vrsqrt.pop %v357
    %v361 = vrsqrt.pop %v358
    %v362 = vrsqrt.pop %v359
    %v363 = vmul.f32 %v342, %v360
    %v364 = vmul.f32 %v343, %v361
    %v365 = vmul.f32 %v344, %v362
    %v366 = vadd.f32 %v83, %v363
    %v367 = vadd.f32 %v84, %v364
    %v368 = vadd.f32 %v85, %v365
    %s369 = scalar_lea.vmem [#allocation8], 32
    %v370 = vld [vmem:[%s369] sm:$0xff]
    %v371 = vld [vmem:[%s369 + $0x8] sm:$0xff]
    %v372 = vld [vmem:[%s369 + $0x10] sm:$0xff]
    %v373 = vld [vmem:[%s369 + $0x18] sm:$0xff]
    %s374 = scalar_lea.vmem %s3, 1
    %v375 = vld [vmem:[%s374] sm:$0x1]
    %s376 = scalar_lea.vmem [#allocation9], 32
    %v377 = vld [vmem:[%s376] sm:$0xff]
    %v378 = vld [vmem:[%s376 + $0x8] sm:$0xff]
    %v379 = vld [vmem:[%s376 + $0x10] sm:$0xff]
    %v380 = vld [vmem:[%s376 + $0x18] sm:$0xff]
    %s381 = scalar_lea.vmem %s5, 1
    %v382 = vld [vmem:[%s381] sm:$0x1]
    %v383 = vsel %vm103, %v365, 0.0
    %v384 = vrot.slane %v383, 4
    %v385 = vadd.f32 %v383, %v384
    %v386 = vrot.slane %v385, 2
    %v387 = vadd.f32 %v385, %v386
    %v388 = vrot.slane %v387, 1
    %v389 = vadd.f32 %v387, %v388
    %v390 = vmul.f32 %v389, 0.088388346
    %v391 = vsel %vm103, %v363, 0.0
    %v392 = vsel %vm103, %v364, 0.0
    %v393 = vadd.f32 %v391, %v392
    %v394 = vrot.slane %v393, 4
    %v395 = vadd.f32 %v393, %v394
    %v396 = vrot.slane %v395, 2
    %v397 = vadd.f32 %v395, %v396
    %v398 = vrot.slane %v397, 1
    %v399 = vadd.f32 %v397, %v398
    %v400 = vmul.f32 %v399, 0.088388346
    %v401 = vsel %vm125, %v390, %v400
    %v402 = vsel %vm126, %v390, %v400
    %v403 = vsel %vm127, %v390, %v400
    %v405 = vlaneseq
    %v406 = vshrl.u32 %v405, 7
    %v407 = vsub.s32 0, %v406
    %v408 = vrot.slane %v375, %v407
    %v411 = vsel %vm103, %v401, 0
    %v414 = vsel %vm103, %v402, 0
    %v417 = vsel %vm103, %v403, 0
    %419 = vmatprep.subr.mxu0 0.0
    %420 = vmatpush1.msra.mxu0 %v370
    %421 = vmatprep.subr.mxu0 0.0
    %422 = vmatpush1.msra.mxu0 %v371
    %423 = vmatprep.subr.mxu0 0.0
    %424 = vmatpush1.msra.mxu0 %v372
    %425 = vmatprep.subr.mxu0 0.0
    %426 = vmatpush1.msra.mxu0 %v373
    %427 = vmatprep.subr.mxu0 0.0
    %428 = vmatpush1.msra.mxu0 0.0
    %429 = vmatprep.subr.mxu0 0.0
    %430 = vmatpush1.msra.mxu0 0.0
    %431 = vmatprep.subr.mxu0 0.0
    %432 = vmatpush1.msra.mxu0 0.0
    %433 = vmatprep.subr.mxu0 0.0
    %434 = vmatpush1.msra.mxu0 0.0
    %435 = vmatprep.subr.mxu0 0.0
    %436 = vmatpush1.msra.mxu0 0.0
    %437 = vmatprep.subr.mxu0 0.0
    %438 = vmatpush1.msra.mxu0 0.0
    %439 = vmatprep.subr.mxu0 0.0
    %440 = vmatpush1.msra.mxu0 0.0
    %441 = vmatprep.subr.mxu0 0.0
    %442 = vmatpush1.msra.mxu0 0.0
    %443 = vmatprep.subr.mxu0 0.0
    %444 = vmatpush1.msra.mxu0 0.0
    %445 = vmatprep.subr.mxu0 0.0
    %446 = vmatpush1.msra.mxu0 0.0
    %447 = vmatprep.subr.mxu0 0.0
    %448 = vmatpush1.msra.mxu0 0.0
    %449 = vmatprep.subr.mxu0 0.0
    %450 = vmatpush1.msra.mxu0 0.0
    %451 = vmatprep.subr.mxu0 0.0
    %452 = vmatpush1.msra.mxu0 0.0
    %453 = vmatprep.subr.mxu0 0.0
    %454 = vmatpush1.msra.mxu0 0.0
    %455 = vmatprep.subr.mxu0 0.0
    %456 = vmatpush1.msra.mxu0 0.0
    %457 = vmatprep.subr.mxu0 0.0
    %458 = vmatpush1.msra.mxu0 0.0
    %459 = vmatprep.subr.mxu0 0.0
    %460 = vmatpush1.msra.mxu0 0.0
    %461 = vmatprep.subr.mxu0 0.0
    %462 = vmatpush1.msra.mxu0 0.0
    %463 = vmatprep.subr.mxu0 0.0
    %464 = vmatpush1.msra.mxu0 0.0
    %465 = vmatprep.subr.mxu0 0.0
    %466 = vmatpush1.msra.mxu0 0.0
    %467 = vmatprep.subr.mxu0 0.0
    %468 = vmatpush1.msra.mxu0 0.0
    %469 = vmatprep.subr.mxu0 0.0
    %470 = vmatpush1.msra.mxu0 0.0
    %471 = vmatprep.subr.mxu0 0.0
    %472 = vmatpush1.msra.mxu0 0.0
    %473 = vmatprep.subr.mxu0 0.0
    %474 = vmatpush1.msra.mxu0 0.0
    %475 = vmatprep.subr.mxu0 0.0
    %476 = vmatpush1.msra.mxu0 0.0
    %477 = vmatprep.subr.mxu0 0.0
    %478 = vmatpush1.msra.mxu0 0.0
    %479 = vmatprep.subr.mxu0 0.0
    %480 = vmatpush1.msra.mxu0 0.0
    %481 = vmatprep.subr.mxu0 0.0
    %482 = vmatpush1.msra.mxu0 0.0
    %483 = vmatprep.mubr.f32.mxu0 0.0
    %484 = vmatmul.mubr.f32.gmra.mrb[0].mxu0 %v411
    %v485 = vpop.f32.mrb[0].mxu0
    %v486 = vadd.f32 %v408, %v485
    %v487 = vpop.f32.mrb[0].mxu0
    %488 = vmatprep.mubr.f32.mxu0 0.0
    %489 = vmatmul.mubr.f32.gmra.mrb[0].mxu0 %v414
    %v490 = vpop.f32.mrb[0].mxu0
    %v491 = vadd.f32 %v408, %v490
    %v492 = vpop.f32.mrb[0].mxu0
    %493 = vmatprep.mubr.f32.mxu0 0.0
    %494 = vmatmul.mubr.f32.gmra.mrb[0].mxu0 %v417
    %v495 = vpop.f32.mrb[0].mxu0
    %v496 = vadd.f32 %v408, %v495
    %v497 = vpop.f32.mrb[0].mxu0
    %498 = vdwg.mxu0
    %vm499 = vcmp.ge.f32.partialorder %v486, 0.0
    %vm500 = vcmp.ge.f32.partialorder %v491, 0.0
    %vm501 = vcmp.ge.f32.partialorder %v496, 0.0
    %v502 = vmul.f32 %v486, 0.01
    %v503 = vmul.f32 %v491, 0.01
    %v504 = vmul.f32 %v496, 0.01
    %v505 = vsel %vm499, %v486, %v502
    %v506 = vsel %vm500, %v491, %v503
    %v507 = vsel %vm501, %v496, %v504
    %v508 = vmul.f32 %v363, %v401
    %v509 = vmul.f32 %v364, %v402
    %v510 = vmul.f32 %v365, %v403
    %v512 = vlaneseq
    %v513 = vshrl.u32 %v512, 7
    %v514 = vsub.s32 0, %v513
    %v515 = vrot.slane %v382, %v514
    %v518 = vsel %vm103, %v508, 0
    %v521 = vsel %vm103, %v509, 0
    %v524 = vsel %vm103, %v510, 0
    %526 = vmatprep.subr.mxu0 0.0
    %527 = vmatpush1.msra.mxu0 %v377
    %528 = vmatprep.subr.mxu0 0.0
    %529 = vmatpush1.msra.mxu0 %v378
    %530 = vmatprep.subr.mxu0 0.0
    %531 = vmatpush1.msra.mxu0 %v379
    %532 = vmatprep.subr.mxu0 0.0
    %533 = vmatpush1.msra.mxu0 %v380
    %534 = vmatprep.subr.mxu0 0.0
    %535 = vmatpush1.msra.mxu0 0.0
    %536 = vmatprep.subr.mxu0 0.0
    %537 = vmatpush1.msra.mxu0 0.0
    %538 = vmatprep.subr.mxu0 0.0
    %539 = vmatpush1.msra.mxu0 0.0
    %540 = vmatprep.subr.mxu0 0.0
    %541 = vmatpush1.msra.mxu0 0.0
    %542 = vmatprep.subr.mxu0 0.0
    %543 = vmatpush1.msra.mxu0 0.0
    %544 = vmatprep.subr.mxu0 0.0
    %545 = vmatpush1.msra.mxu0 0.0
    %546 = vmatprep.subr.mxu0 0.0
    %547 = vmatpush1.msra.mxu0 0.0
    %548 = vmatprep.subr.mxu0 0.0
    %549 = vmatpush1.msra.mxu0 0.0
    %550 = vmatprep.subr.mxu0 0.0
    %551 = vmatpush1.msra.mxu0 0.0
    %552 = vmatprep.subr.mxu0 0.0
    %553 = vmatpush1.msra.mxu0 0.0
    %554 = vmatprep.subr.mxu0 0.0
    %555 = vmatpush1.msra.mxu0 0.0
    %556 = vmatprep.subr.mxu0 0.0
    %557 = vmatpush1.msra.mxu0 0.0
    %558 = vmatprep.subr.mxu0 0.0
    %559 = vmatpush1.msra.mxu0 0.0
    %560 = vmatprep.subr.mxu0 0.0
    %561 = vmatpush1.msra.mxu0 0.0
    %562 = vmatprep.subr.mxu0 0.0
    %563 = vmatpush1.msra.mxu0 0.0
    %564 = vmatprep.subr.mxu0 0.0
    %565 = vmatpush1.msra.mxu0 0.0
    %566 = vmatprep.subr.mxu0 0.0
    %567 = vmatpush1.msra.mxu0 0.0
    %568 = vmatprep.subr.mxu0 0.0
    %569 = vmatpush1.msra.mxu0 0.0
    %570 = vmatprep.subr.mxu0 0.0
    %571 = vmatpush1.msra.mxu0 0.0
    %572 = vmatprep.subr.mxu0 0.0
    %573 = vmatpush1.msra.mxu0 0.0
    %574 = vmatprep.subr.mxu0 0.0
    %575 = vmatpush1.msra.mxu0 0.0
    %576 = vmatprep.subr.mxu0 0.0
    %577 = vmatpush1.msra.mxu0 0.0
    %578 = vmatprep.subr.mxu0 0.0
    %579 = vmatpush1.msra.mxu0 0.0
    %580 = vmatprep.subr.mxu0 0.0
    %581 = vmatpush1.msra.mxu0 0.0
    %582 = vmatprep.subr.mxu0 0.0
    %583 = vmatpush1.msra.mxu0 0.0
    %584 = vmatprep.subr.mxu0 0.0
    %585 = vmatpush1.msra.mxu0 0.0
    %586 = vmatprep.subr.mxu0 0.0
    %587 = vmatpush1.msra.mxu0 0.0
    %588 = vmatprep.subr.mxu0 0.0
    %589 = vmatpush1.msra.mxu0 0.0
    %590 = vmatprep.mubr.f32.mxu0 0.0
    %591 = vmatmul.mubr.f32.gmra.mrb[0].mxu0 %v518
    %v592 = vpop.f32.mrb[0].mxu0
    %v593 = vadd.f32 %v515, %v592
    %v594 = vpop.f32.mrb[0].mxu0
    %595 = vmatprep.mubr.f32.mxu0 0.0
    %596 = vmatmul.mubr.f32.gmra.mrb[0].mxu0 %v521
    %v597 = vpop.f32.mrb[0].mxu0
    %v598 = vadd.f32 %v515, %v597
    %v599 = vpop.f32.mrb[0].mxu0
    %600 = vmatprep.mubr.f32.mxu0 0.0
    %601 = vmatmul.mubr.f32.gmra.mrb[0].mxu0 %v524
    %v602 = vpop.f32.mrb[0].mxu0
    %v603 = vadd.f32 %v515, %v602
    %v604 = vpop.f32.mrb[0].mxu0
    %605 = vdwg.mxu0
    %vm606 = vcmp.ge.f32.partialorder %v593, 0.0
    %vm607 = vcmp.ge.f32.partialorder %v598, 0.0
    %vm608 = vcmp.ge.f32.partialorder %v603, 0.0
    %v609 = vmul.f32 %v593, 0.01
    %v610 = vmul.f32 %v598, 0.01
    %v611 = vmul.f32 %v603, 0.01
    %v612 = vsel %vm606, %v593, %v609
    %v613 = vsel %vm607, %v598, %v610
    %v614 = vsel %vm608, %v603, %v611
    %v615 = vadd.f32 %v505, %v612
    %v616 = vadd.f32 %v506, %v613
    %v617 = vadd.f32 %v507, %v614
    %v618 = vmul.f32 %v615, %v615
    %v619 = vmul.f32 %v616, %v616
    %v620 = vmul.f32 %v617, %v617
    %v621 = vsel %vm103, %v618, 0.0
    %622 = vadd.xlane.f32.xlu0 %v621
    %v623 = vpop.xlane.xlu0 %622
    %v624 = vsel %vm103, %v619, 0.0
    %625 = vadd.xlane.f32.xlu0 %v624
    %v626 = vpop.xlane.xlu0 %625
    %v627 = vsel %vm103, %v620, 0.0
    %628 = vadd.xlane.f32.xlu0 %v627
    %v629 = vpop.xlane.xlu0 %628
    %v630 = vmax.f32 %v623, 1e-24
    %v631 = vmax.f32 %v626, 1e-24
    %v632 = vmax.f32 %v629, 1e-24
    %v633 = vrsqrt.pop %v630
    %v634 = vrsqrt.pop %v631
    %v635 = vrsqrt.pop %v632
    %v636 = vmul.f32 %v615, %v633
    %v637 = vmul.f32 %v616, %v634
    %v638 = vmul.f32 %v617, %v635
    %v639 = vadd.f32 %v366, %v636
    %v640 = vadd.f32 %v367, %v637
    %v641 = vadd.f32 %v368, %v638
    %v642 = vsel %vm103, %v639, 0.0
    %v643 = vsel %vm103, %v640, 0.0
    %v644 = vadd.f32 %v642, %v643
    %v645 = vrot.slane %v644, 4
    %v646 = vadd.f32 %v644, %v645
    %v647 = vrot.slane %v646, 2
    %v648 = vadd.f32 %v646, %v647
    %v649 = vrot.slane %v648, 1
    %v650 = vadd.f32 %v648, %v649
    %v651 = vmul.f32 %v650, 0.0069444445
    %v653 = vsel %vm103, %v651, 0
    %v656 = vsel %vm103, %v641, 0
    %v659 = vsel %vm103, 0.0, 0
    %661 = vmatprep.subr.mxu0 0.0
    %662 = vmatpush1.xpose.msra.mxu0 %v656
    %663 = vmatprep.subr.mxu0 0.0
    %664 = vmatpush1.xpose.msra.mxu0 %v659
    %665 = vmatprep.subr.mxu0 0.0
    %666 = vmatpush1.xpose.msra.mxu0 %v659
    %667 = vmatprep.subr.mxu0 0.0
    %668 = vmatpush1.xpose.msra.mxu0 %v659
    %669 = vmatprep.subr.mxu0 0.0
    %670 = vmatpush1.xpose.msra.mxu0 %v659
    %671 = vmatprep.subr.mxu0 0.0
    %672 = vmatpush1.xpose.msra.mxu0 %v659
    %673 = vmatprep.subr.mxu0 0.0
    %674 = vmatpush1.xpose.msra.mxu0 %v659
    %675 = vmatprep.subr.mxu0 0.0
    %676 = vmatpush1.xpose.msra.mxu0 %v659
    %677 = vmatprep.subr.mxu0 0.0
    %678 = vmatpush1.xpose.msra.mxu0 %v659
    %679 = vmatprep.subr.mxu0 0.0
    %680 = vmatpush1.xpose.msra.mxu0 %v659
    %681 = vmatprep.subr.mxu0 0.0
    %682 = vmatpush1.xpose.msra.mxu0 %v659
    %683 = vmatprep.subr.mxu0 0.0
    %684 = vmatpush1.xpose.msra.mxu0 %v659
    %685 = vmatprep.subr.mxu0 0.0
    %686 = vmatpush1.xpose.msra.mxu0 %v659
    %687 = vmatprep.subr.mxu0 0.0
    %688 = vmatpush1.xpose.msra.mxu0 %v659
    %689 = vmatprep.subr.mxu0 0.0
    %690 = vmatpush1.xpose.msra.mxu0 %v659
    %691 = vmatprep.subr.mxu0 0.0
    %692 = vmatpush1.xpose.msra.mxu0 %v659
    %693 = vmatprep.subr.mxu0 0.0
    %694 = vmatpush1.xpose.msra.mxu0 0.0
    %695 = vmatprep.subr.mxu0 0.0
    %696 = vmatpush1.xpose.msra.mxu0 0.0
    %697 = vmatprep.subr.mxu0 0.0
    %698 = vmatpush1.xpose.msra.mxu0 0.0
    %699 = vmatprep.subr.mxu0 0.0
    %700 = vmatpush1.xpose.msra.mxu0 0.0
    %701 = vmatprep.subr.mxu0 0.0
    %702 = vmatpush1.xpose.msra.mxu0 0.0
    %703 = vmatprep.subr.mxu0 0.0
    %704 = vmatpush1.xpose.msra.mxu0 0.0
    %705 = vmatprep.subr.mxu0 0.0
    %706 = vmatpush1.xpose.msra.mxu0 0.0
    %707 = vmatprep.subr.mxu0 0.0
    %708 = vmatpush1.xpose.msra.mxu0 0.0
    %709 = vmatprep.subr.mxu0 0.0
    %710 = vmatpush1.xpose.msra.mxu0 0.0
    %711 = vmatprep.subr.mxu0 0.0
    %712 = vmatpush1.xpose.msra.mxu0 0.0
    %713 = vmatprep.subr.mxu0 0.0
    %714 = vmatpush1.xpose.msra.mxu0 0.0
    %715 = vmatprep.subr.mxu0 0.0
    %716 = vmatpush1.xpose.msra.mxu0 0.0
    %717 = vmatprep.subr.mxu0 0.0
    %718 = vmatpush1.xpose.msra.mxu0 0.0
    %719 = vmatprep.subr.mxu0 0.0
    %720 = vmatpush1.xpose.msra.mxu0 0.0
    %721 = vmatprep.subr.mxu0 0.0
    %722 = vmatpush1.xpose.msra.mxu0 0.0
    %723 = vmatprep.subr.mxu0 0.0
    %724 = vmatpush1.xpose.msra.mxu0 0.0
    %725 = vmatprep.mubr.f32.mxu0 0.0
    %726 = vmatmul.mubr.f32.gmra.mrb[0].mxu0 %v653
    %v727 = vpop.f32.mrb[0].mxu0
    %v728 = vadd.f32 0.0, %v727
    %v729 = vpop.f32.mrb[0].mxu0
    %730 = vdwg.mxu0
    %v731 = vxor.u32 %v728, 2147483648
    %v732 = vmul.f32 %v731, 1.442695
    %v733 = vpow.pop %v732
    %v734 = vadd.f32 %v733, 1.0
    %v735 = vrcp.pop %v734
    %v736 = vmul.f32 1.0, %v735
    %737 = vst [vmem:[#allocation11] sm:$0x1] %v736
    %v738 = vld [vmem:[%s6] sm:$0x1]
    %v739 = vmin.f32 %v728, 0.0
    %v740 = vand.u32 2147483647, %v728
    %v741 = vsub.f32 0.0, %v740
    %v742 = vmul.f32 %v741, 1.442695
    %v743 = vpow.pop %v742
    %v744 = vadd.f32 %v743, 1.0
    %v745 = vlog2.pop %v744
    %v746 = vmul.f32 %v745, 0.6931472
    %v747 = vmul.f32 -0.5, %v743
    %v748 = vadd.f32 %v747, 1.0
    %v749 = vmul.f32 %v748, %v743
    %v750 = vand.u32 2147483647, %v743
    %vm751 = vcmp.lt.f32.partialorder %v750, 0.0004427343
    %v752 = vsel %vm751, %v749, %v746
    %v753 = vsub.f32 %v739, %v752
    %v754 = vsub.f32 0.0, %v728
    %v755 = vmin.f32 %v754, 0.0
    %v756 = vand.u32 2147483647, %v754
    %v757 = vsub.f32 0.0, %v756
    %v758 = vmul.f32 %v757, 1.442695
    %v759 = vpow.pop %v758
    %v760 = vadd.f32 %v759, 1.0
    %v761 = vlog2.pop %v760
    %v762 = vmul.f32 %v761, 0.6931472
    %v763 = vmul.f32 -0.5, %v759
    %v764 = vadd.f32 %v763, 1.0
    %v765 = vmul.f32 %v764, %v759
    %v766 = vand.u32 2147483647, %v759
    %vm767 = vcmp.lt.f32.partialorder %v766, 0.0004427343
    %v768 = vsel %vm767, %v765, %v762
    %v769 = vsub.f32 %v755, %v768
    %v770 = vmul.f32 %v738, %v753
    %v771 = vsub.f32 1.0, %v738
    %v772 = vmul.f32 %v771, %v769
    %v773 = vadd.f32 %v770, %v772
    %v774 = vsub.f32 0.0, %v773
    %v775 = vlaneseq
    %v776 = vand.u32 %v775, 127
    %vm777 = vcmp.lt.s32.totalorder %v776, 8
    %v778 = vsel %vm777, %v774, 0.0
    %vm779 = vcmask 1040384
    %v780 = vsel %vm779, %v778, 0.0
    %781 = vadd.xlane.f32.xlu0 %v780
    %v782 = vpop.xlane.xlu0 %781
    %v783 = vrot.slane %v782, 4
    %v784 = vadd.f32 %v782, %v783
    %v785 = vrot.slane %v784, 2
    %v786 = vadd.f32 %v784, %v785
    %v787 = vrot.slane %v786, 1
    %v788 = vadd.f32 %v786, %v787
    %s789 = vtos %v788
    %s790 = smul.f32 %s789, 0.125
    %s791 = scalar_lea.smem [#allocation12], 0
    %792 = sst [smem:[%s791]] %s790
    // Predicated region
    $region46: #{tpu_custom_call.1} parent=1 // pred_check
      _
    $region47: #{tpu_custom_call.1} parent=1 // pred_check_branch
      %794 = sbr.rel (0) target = $region49
    $region48: #{tpu_custom_call.1} parent=1 // pred_region
      %s796 = ssub.s32 16, 16
      %797 = vsyncadd [#allocation4], %s796
      %s799 = sshll.u32 [#allocation11], 4
      %s800 = int_to_ptr.vmem [resolvable:$true] %s799
      %802 = dma.vmem_to_hbm [thread:$0]  %s800, 16, %s7, [#allocation4]
    $region49: #{tpu_custom_call.1} parent=1 // pred_fallthru
      _
    // Predicated region
    $region50: #{tpu_custom_call.1} parent=1 // pred_check
      _
    $region51: #{tpu_custom_call.1} parent=1 // pred_check_branch
      %804 = sbr.rel (0) target = $region53
    $region52: #{tpu_custom_call.1} parent=1 // pred_region
      %s806 = ssub.s32 16, 16
      %807 = vsyncadd [#allocation5], %s806
      %810 = dma.smem_to_hbm [#allocation12], 16, %s8, [#allocation5]
    $region53: #{tpu_custom_call.1} parent=1 // pred_fallthru
      _
    // Predicated region
    $region54: #{tpu_custom_call.1} parent=1 // pred_check
      _
    $region55: #{tpu_custom_call.1} parent=1 // pred_check_branch
      %812 = sbr.rel (0) target = $region57
    $region56: #{tpu_custom_call.1} parent=1 // pred_region
      %813 = dma.done [#allocation4], 16
    $region57: #{tpu_custom_call.1} parent=1 // pred_fallthru
      _
    // Predicated region
    $region58: #{tpu_custom_call.1} parent=1 // pred_check
      _
    $region59: #{tpu_custom_call.1} parent=1 // pred_check_branch
      %815 = sbr.rel (0) target = $region61
    $region60: #{tpu_custom_call.1} parent=1 // pred_region
      %816 = dma.done [#allocation5], 16
    $region61: #{tpu_custom_call.1} parent=1 // pred_fallthru
      _
    %817 = sfence
    %818 = vsyncpa [#allocation3], 1
    %819 = vsyncpa [#allocation7], 1
    %820 = vsyncpa [#allocation10], 1
    %821 = vsyncpa [#allocation4], 1
    %822 = vsyncpa [#allocation5], 1

</llo_original>
